<compile_context>
chip_gen: v7x
topology: tpu7x:2x2x1
jax: 0.10.0
libtpu: 0.0.40
codegen_flags: <defaults>
</compile_context>

<pallas_src>
import functools

import jax
import jax.numpy as jnp
import numpy as np
from jax import lax
from jax.experimental import pallas as pl
from jax.experimental.pallas import tpu as pltpu


# ----------------------------------------------------------------------------
# Fused kernel: synthetic inner model + CFG combine, single invocation.
# ----------------------------------------------------------------------------
def _kcfg_fused_kernel(scalars_ref, x_ref, conds_ref, w_ref, out_ref, *,
                       batch, channels, cond_dim):
    """Layouts (lane axis last, all f32):
         scalars_ref : (B+1,)            SMEM  [sigma_0..sigma_{B-1}, cond_scale]
         x_ref       : (B*C, HW)         VMEM  full slab -> unmasked vld/vst
         conds_ref   : (2, T, B*D)       VMEM  [uncond, cond], tokens on sublanes
         w_ref       : (B*C, B*D+1+B*C)  VMEM  packed [ A | b_mix | M ]
                         A    = kron(I_B, W_cond^T)  lanes [0, B*D)
                         bmix = tile(b_mix, B)       lane  [B*D]
                         M    = kron(I_B, W_mix^T)   lanes [B*D+1, B*D+1+B*C)
         out_ref     : (B*C, HW)         VMEM
    """
    BC = batch * channels
    BD = batch * cond_dim
    BMIX_OFF = BD
    M_OFF = BD + 1

    # --- per-row noise scalings from SMEM sigma (scalar splats, B-1 selects) --
    row = lax.broadcasted_iota(jnp.int32, (BC, 1), 0)
    sigma_col = jnp.zeros((BC, 1), jnp.float32) + scalars_ref[0]
    for b in range(1, batch):                       # hoisted, traced once
        sigma_col = jnp.where(row >= b * channels, scalars_ref[b], sigma_col)
    c_in = lax.rsqrt(sigma_col * sigma_col + 1.0)   # (BC, 1)   EUP
    c_out = -sigma_col                              # (BC, 1)
    cond_scale = scalars_ref[batch]                 # SMEM scalar -> no recompile
                                                    # when the CFG scale changes

    # --- conditioning bias, CFG folded ----------------------------------------
    # eps is affine in the conditioning projection, so mixing the token
    # embeddings with the CFG scale first, pooling once and projecting once is
    # exactly uncond_proj + scale * (cond_proj - uncond_proj).
    u_tok = conds_ref[0]                                       # (T, B*D)
    c_tok = conds_ref[1]                                       # (T, B*D)
    mix_tok = u_tok + (c_tok - u_tok) * cond_scale             # (T, B*D)  VPU
    mix_row = jnp.mean(mix_tok, axis=0, keepdims=True)         # (1, B*D)  sublane-reduce
    a_blk = w_ref[:, 0:BD]                                     # (BC, B*D) lane-aligned
    bmix_col = w_ref[:, BMIX_OFF:BMIX_OFF + 1]                 # (BC, 1)
    bias_col = jnp.sum(a_blk * mix_row, axis=1, keepdims=True) + bmix_col

    # --- 1x1-conv channel mix: exact-f32 rank-1 updates on the full slab ------
    # (block-diagonal M applied as B*C rank-1 updates; see header for why this
    #  stays on the VPU at C=4 — it becomes one MXU matmul at real sizes.)
    xb = x_ref[...]                                            # (BC, HW) one load
    xs = xb * c_in                                             # (BC, HW)
    m_blk = w_ref[:, M_OFF:M_OFF + BC]                         # (BC, BC) loaded once
    eps = m_blk[:, 0:1] * xs[0:1, :]
    for r in range(1, BC):
        eps = eps + m_blk[:, r:r + 1] * xs[r:r + 1, :]         # (BC, HW)

    # out = x + c_out * (channel_mix + b_mix + cfg_bias)  — one unmasked store
    out_ref[...] = (xb + (eps + bias_col) * c_out).astype(out_ref.dtype)


# ----------------------------------------------------------------------------
# Forward pass (mirrors KCFGDenoiser.forward)
# ----------------------------------------------------------------------------
def kcfg_denoiser_forward(x, sigma, uncond, conditions, cond_scale, params):
    """x: (B, C, H, W) f32, sigma: (B,), uncond / conditions[0]: (B, T, D)."""
    b, c, h, w = x.shape
    conditions = list(conditions)
    # The reference module only does torch.cat([x] * 2), so exactly one
    # conditioning tensor is well-defined; mirror that restriction explicitly.
    assert len(conditions) == 1, "KCFGDenoiser supports exactly one condition"
    cond = conditions[0]

    w_mix, b_mix, w_cond = params
    t, d = uncond.shape[1], uncond.shape[2]
    hw = h * w
    bc, bd = b * c, b * d

    # ---- layout plumbing (all tiny and/or free views) ------------------------
    x_slab = x.reshape(bc, hw)                         # NCHW -> (B*C, HW), free view
    scalars = jnp.concatenate([sigma.astype(jnp.float32),
                               jnp.array([cond_scale], jnp.float32)])
    conds_t = (jnp.stack([uncond, cond], axis=0)       # (2, B, T, D)
               .transpose(0, 2, 1, 3)                  # (2, T, B, D)
               .reshape(2, t, bd))                     # (2, T, B*D)
    eye_b = jnp.eye(b, dtype=jnp.float32)
    a_blk = jnp.kron(eye_b, w_cond.T)                  # (B*C, B*D) block-diag
    m_blk = jnp.kron(eye_b, w_mix.T)                   # (B*C, B*C) block-diag
    bmix_col = jnp.tile(b_mix.reshape(-1), b).reshape(bc, 1)
    weights = jnp.concatenate([a_blk, bmix_col, m_blk], axis=1)   # (B*C, B*D+1+B*C)

    kernel = functools.partial(_kcfg_fused_kernel,
                               batch=b, channels=c, cond_dim=d)

    out_slab = pl.pallas_call(
        kernel,
        out_shape=jax.ShapeDtypeStruct((bc, hw), jnp.float32),
        in_specs=[
            pl.BlockSpec(memory_space=pltpu.MemorySpace.SMEM),   # sigma + cond_scale
            pl.BlockSpec(memory_space=pltpu.MemorySpace.VMEM),   # x slab (B*C, HW)
            pl.BlockSpec(memory_space=pltpu.MemorySpace.VMEM),   # stacked conds
            pl.BlockSpec(memory_space=pltpu.MemorySpace.VMEM),   # packed weights
        ],
        out_specs=pl.BlockSpec(memory_space=pltpu.MemorySpace.VMEM),
    )(scalars, x_slab, conds_t, weights)

    return out_slab.reshape(b, c, h, w)                # (B*C, HW) -> NCHW, free view


# ----------------------------------------------------------------------------
# Pure-JAX reference (mirrors the PyTorch module structure exactly)
# ----------------------------------------------------------------------------
def _ref_forward(x, sigma, uncond, conditions, cond_scale, params):
    w_mix, b_mix, w_cond = params
    b, c, h, w = x.shape
    L = len(conditions)
    hp = jax.lax.Precision.HIGHEST

    x_in = jnp.concatenate([x] * 2, axis=0)
    sigma_in = jnp.concatenate([sigma] * 2, axis=0)
    cond_in = jnp.concatenate([uncond, *conditions], axis=0)

    xf = x_in.transpose(0, 2, 3, 1).reshape(x_in.shape[0], h * w, c)
    c_in = 1.0 / jnp.sqrt(sigma_in ** 2 + 1.0)
    c_out = -sigma_in
    eps = (jnp.einsum("nsk,kc->nsc", xf * c_in[:, None, None], w_mix,
                      precision=hp)
           + b_mix
           + jnp.einsum("nd,dc->nc", jnp.mean(cond_in, axis=1), w_cond,
                        precision=hp)[:, None, :])
    den = xf + eps * c_out[:, None, None]

    chunks = jnp.split(den, 1 + L, axis=0)
    u = chunks[0]
    cond_mean = sum(chunks[1:]) / L
    out = u + (cond_mean - u) * cond_scale
    return out.reshape(b, h, w, c).transpose(0, 3, 1, 2)


if __name__ == "__main__":
    B, C, H, W = 2, 4, 16, 16     # image latents (NCHW)
    T, D = 8, 32                  # conditioning tokens / hidden
    cond_scale = 7.5

    key = jax.random.PRNGKey(0)
    k1, k2, k3, k4, k5, k6, k7 = jax.random.split(key, 7)

    # Deterministic synthetic "inner model" parameters.
    w_mix = jax.random.normal(k1, (C, C), jnp.float32) * 0.2
    b_mix = jax.random.normal(k2, (1, C), jnp.float32) * 0.1
    w_cond = jax.random.normal(k3, (D, C), jnp.float32) * 0.1
    params = (w_mix, b_mix, w_cond)

    # Inputs.
    x = jax.random.normal(k4, (B, C, H, W), jnp.float32)
    sigma = jax.random.uniform(k5, (B,), jnp.float32, minval=0.5, maxval=2.0)
    uncond = jax.random.normal(k6, (B, T, D), jnp.float32)
    cond_emb = jax.random.normal(k7, (B, T, D), jnp.float32)
    conditions = [cond_emb]

    out = kcfg_denoiser_forward(x, sigma, uncond, conditions, cond_scale, params)
    out = jax.block_until_ready(out)

    ref = _ref_forward(x, sigma, uncond, conditions, cond_scale, params)
    np.testing.assert_allclose(np.asarray(out), np.asarray(ref),
                               rtol=1e-5, atol=1e-5)
    assert out.shape == (B, C, H, W)
    print("KERNEL_OK")
</pallas_src>

<mosaic_0001>
module attributes {stable_mosaic.version = 11 : i64} {
  func.func @_kcfg_fused_kernel(%arg0: memref<3xf32, #tpu.memory_space<smem>>, %arg1: memref<8x256xf32, #tpu.memory_space<vmem>>, %arg2: memref<2x8x64xf32, #tpu.memory_space<vmem>>, %arg3: memref<8x73xf32, #tpu.memory_space<vmem>>, %arg4: memref<8x256xf32, #tpu.memory_space<vmem>>) attributes {dimension_semantics = [], scalar_prefetch = 0 : i64, scratch_operands = 0 : i64, tpu.core_type = #tpu.core_type<tc>} {
    %0 = tpu.iota {dimensions = array<i32: 0>} : vector<8x1xi32>
    %cst = arith.constant 0.000000e+00 : f32
    %1 = vector.broadcast %cst : f32 to vector<8x1xf32>
    %c0 = arith.constant 0 : index
    %2 = memref.load %arg0[%c0] : memref<3xf32, #tpu.memory_space<smem>>
    %3 = vector.broadcast %2 : f32 to vector<8x1xf32>
    %4 = arith.addf %1, %3 : vector<8x1xf32>
    %c4_i32 = arith.constant 4 : i32
    %5 = vector.broadcast %c4_i32 : i32 to vector<8x1xi32>
    %6 = arith.cmpi sge, %0, %5 : vector<8x1xi32>
    %c1 = arith.constant 1 : index
    %7 = memref.load %arg0[%c1] : memref<3xf32, #tpu.memory_space<smem>>
    %8 = vector.broadcast %7 : f32 to vector<8x1xf32>
    %9 = arith.select %6, %8, %4 : vector<8x1xi1>, vector<8x1xf32>
    %10 = arith.mulf %9, %9 : vector<8x1xf32>
    %cst_0 = arith.constant 1.000000e+00 : f32
    %11 = vector.broadcast %cst_0 : f32 to vector<8x1xf32>
    %12 = arith.addf %10, %11 : vector<8x1xf32>
    %13 = math.rsqrt %12 : vector<8x1xf32>
    %cst_1 = arith.constant 0.000000e+00 : f32
    %14 = vector.broadcast %cst_1 : f32 to vector<8x1xf32>
    %15 = arith.subf %14, %9 : vector<8x1xf32>
    %c2 = arith.constant 2 : index
    %16 = memref.load %arg0[%c2] : memref<3xf32, #tpu.memory_space<smem>>
    %c0_2 = arith.constant 0 : index
    %c0_3 = arith.constant 0 : index
    %c0_4 = arith.constant 0 : index
    %17 = vector.load %arg2[%c0_2, %c0_3, %c0_4] : memref<2x8x64xf32, #tpu.memory_space<vmem>>, vector<1x8x64xf32>
    %18 = vector.shape_cast %17 : vector<1x8x64xf32> to vector<8x64xf32>
    %c1_5 = arith.constant 1 : index
    %c0_6 = arith.constant 0 : index
    %c0_7 = arith.constant 0 : index
    %19 = vector.load %arg2[%c1_5, %c0_6, %c0_7] : memref<2x8x64xf32, #tpu.memory_space<vmem>>, vector<1x8x64xf32>
    %20 = vector.shape_cast %19 : vector<1x8x64xf32> to vector<8x64xf32>
    %21 = arith.subf %20, %18 : vector<8x64xf32>
    %22 = vector.broadcast %16 : f32 to vector<8x64xf32>
    %23 = arith.mulf %21, %22 : vector<8x64xf32>
    %24 = arith.addf %18, %23 : vector<8x64xf32>
    %cst_8 = arith.constant dense<0.000000e+00> : vector<64xf32>
    %25 = vector.multi_reduction <add>, %24, %cst_8 [0] : vector<8x64xf32> to vector<64xf32>
    %26 = vector.shape_cast %25 : vector<64xf32> to vector<1x64xf32>
    %cst_9 = arith.constant 8.000000e+00 : f32
    %27 = vector.broadcast %cst_9 : f32 to vector<1x64xf32>
    %28 = arith.divf %26, %27 : vector<1x64xf32>
    %c0_10 = arith.constant 0 : index
    %c0_11 = arith.constant 0 : index
    %29 = vector.load %arg3[%c0_10, %c0_11] : memref<8x73xf32, #tpu.memory_space<vmem>>, vector<8x64xf32>
    %c0_12 = arith.constant 0 : index
    %c64 = arith.constant 64 : index
    %30 = vector.load %arg3[%c0_12, %c64] : memref<8x73xf32, #tpu.memory_space<vmem>>, vector<8x1xf32>
    %31 = vector.broadcast %28 : vector<1x64xf32> to vector<8x64xf32>
    %32 = arith.mulf %29, %31 : vector<8x64xf32>
    %cst_13 = arith.constant dense<0.000000e+00> : vector<8xf32>
    %33 = vector.multi_reduction <add>, %32, %cst_13 [1] : vector<8x64xf32> to vector<8xf32>
    %34 = vector.shape_cast %33 : vector<8xf32> to vector<8x1xf32>
    %35 = arith.addf %34, %30 : vector<8x1xf32>
    %c0_14 = arith.constant 0 : index
    %c0_15 = arith.constant 0 : index
    %36 = vector.load %arg1[%c0_14, %c0_15] : memref<8x256xf32, #tpu.memory_space<vmem>>, vector<8x256xf32>
    %37 = vector.broadcast %13 : vector<8x1xf32> to vector<8x256xf32>
    %38 = arith.mulf %36, %37 : vector<8x256xf32>
    %c0_16 = arith.constant 0 : index
    %c65 = arith.constant 65 : index
    %39 = vector.load %arg3[%c0_16, %c65] : memref<8x73xf32, #tpu.memory_space<vmem>>, vector<8x8xf32>
    %40 = vector.extract_strided_slice %39 {offsets = [0, 0], sizes = [8, 1], strides = [1, 1]} : vector<8x8xf32> to vector<8x1xf32>
    %41 = vector.extract_strided_slice %38 {offsets = [0, 0], sizes = [1, 256], strides = [1, 1]} : vector<8x256xf32> to vector<1x256xf32>
    %42 = vector.broadcast %40 : vector<8x1xf32> to vector<8x256xf32>
    %43 = vector.broadcast %41 : vector<1x256xf32> to vector<8x256xf32>
    %44 = arith.mulf %42, %43 : vector<8x256xf32>
    %45 = vector.extract_strided_slice %39 {offsets = [0, 1], sizes = [8, 1], strides = [1, 1]} : vector<8x8xf32> to vector<8x1xf32>
    %46 = vector.extract_strided_slice %38 {offsets = [1, 0], sizes = [1, 256], strides = [1, 1]} : vector<8x256xf32> to vector<1x256xf32>
    %47 = vector.broadcast %45 : vector<8x1xf32> to vector<8x256xf32>
    %48 = vector.broadcast %46 : vector<1x256xf32> to vector<8x256xf32>
    %49 = arith.mulf %47, %48 : vector<8x256xf32>
    %50 = arith.addf %44, %49 : vector<8x256xf32>
    %51 = vector.extract_strided_slice %39 {offsets = [0, 2], sizes = [8, 1], strides = [1, 1]} : vector<8x8xf32> to vector<8x1xf32>
    %52 = vector.extract_strided_slice %38 {offsets = [2, 0], sizes = [1, 256], strides = [1, 1]} : vector<8x256xf32> to vector<1x256xf32>
    %53 = vector.broadcast %51 : vector<8x1xf32> to vector<8x256xf32>
    %54 = vector.broadcast %52 : vector<1x256xf32> to vector<8x256xf32>
    %55 = arith.mulf %53, %54 : vector<8x256xf32>
    %56 = arith.addf %50, %55 : vector<8x256xf32>
    %57 = vector.extract_strided_slice %39 {offsets = [0, 3], sizes = [8, 1], strides = [1, 1]} : vector<8x8xf32> to vector<8x1xf32>
    %58 = vector.extract_strided_slice %38 {offsets = [3, 0], sizes = [1, 256], strides = [1, 1]} : vector<8x256xf32> to vector<1x256xf32>
    %59 = vector.broadcast %57 : vector<8x1xf32> to vector<8x256xf32>
    %60 = vector.broadcast %58 : vector<1x256xf32> to vector<8x256xf32>
    %61 = arith.mulf %59, %60 : vector<8x256xf32>
    %62 = arith.addf %56, %61 : vector<8x256xf32>
    %63 = vector.extract_strided_slice %39 {offsets = [0, 4], sizes = [8, 1], strides = [1, 1]} : vector<8x8xf32> to vector<8x1xf32>
    %64 = vector.extract_strided_slice %38 {offsets = [4, 0], sizes = [1, 256], strides = [1, 1]} : vector<8x256xf32> to vector<1x256xf32>
    %65 = vector.broadcast %63 : vector<8x1xf32> to vector<8x256xf32>
    %66 = vector.broadcast %64 : vector<1x256xf32> to vector<8x256xf32>
    %67 = arith.mulf %65, %66 : vector<8x256xf32>
    %68 = arith.addf %62, %67 : vector<8x256xf32>
    %69 = vector.extract_strided_slice %39 {offsets = [0, 5], sizes = [8, 1], strides = [1, 1]} : vector<8x8xf32> to vector<8x1xf32>
    %70 = vector.extract_strided_slice %38 {offsets = [5, 0], sizes = [1, 256], strides = [1, 1]} : vector<8x256xf32> to vector<1x256xf32>
    %71 = vector.broadcast %69 : vector<8x1xf32> to vector<8x256xf32>
    %72 = vector.broadcast %70 : vector<1x256xf32> to vector<8x256xf32>
    %73 = arith.mulf %71, %72 : vector<8x256xf32>
    %74 = arith.addf %68, %73 : vector<8x256xf32>
    %75 = vector.extract_strided_slice %39 {offsets = [0, 6], sizes = [8, 1], strides = [1, 1]} : vector<8x8xf32> to vector<8x1xf32>
    %76 = vector.extract_strided_slice %38 {offsets = [6, 0], sizes = [1, 256], strides = [1, 1]} : vector<8x256xf32> to vector<1x256xf32>
    %77 = vector.broadcast %75 : vector<8x1xf32> to vector<8x256xf32>
    %78 = vector.broadcast %76 : vector<1x256xf32> to vector<8x256xf32>
    %79 = arith.mulf %77, %78 : vector<8x256xf32>
    %80 = arith.addf %74, %79 : vector<8x256xf32>
    %81 = vector.extract_strided_slice %39 {offsets = [0, 7], sizes = [8, 1], strides = [1, 1]} : vector<8x8xf32> to vector<8x1xf32>
    %82 = vector.extract_strided_slice %38 {offsets = [7, 0], sizes = [1, 256], strides = [1, 1]} : vector<8x256xf32> to vector<1x256xf32>
    %83 = vector.broadcast %81 : vector<8x1xf32> to vector<8x256xf32>
    %84 = vector.broadcast %82 : vector<1x256xf32> to vector<8x256xf32>
    %85 = arith.mulf %83, %84 : vector<8x256xf32>
    %86 = arith.addf %80, %85 : vector<8x256xf32>
    %87 = vector.broadcast %35 : vector<8x1xf32> to vector<8x256xf32>
    %88 = arith.addf %86, %87 : vector<8x256xf32>
    %89 = vector.broadcast %15 : vector<8x1xf32> to vector<8x256xf32>
    %90 = arith.mulf %88, %89 : vector<8x256xf32>
    %91 = arith.addf %36, %90 : vector<8x256xf32>
    %c0_17 = arith.constant 0 : index
    %c0_18 = arith.constant 0 : index
    %92 = vector.load %arg4[%c0_17, %c0_18] : memref<8x256xf32, #tpu.memory_space<vmem>>, vector<8x256xf32>
    tpu.vector_store %arg4[%c0_17, %c0_18], %91 {strides = array<i32>} : memref<8x256xf32, #tpu.memory_space<vmem>>, vector<8x256xf32>,
    return
  }
}

</mosaic_0001>

<llo_original>
// kernel: tpu_custom_call.1
$region0: #{tpu_custom_call.1}
  #allocation0 [shape = 'u32[]', space=smem, size = 0x4, offset = 0x4, fixed_abs, tag = 'smem constant byte address 0x4 - core index']
  #allocation1 [shape = 'u32[144,128]{1,0:T(1,128)}', space=vmem, size = 0x12000, scoped, tag = 'internal scratch']
  %s0 = inlined_call_operand.hbm [shape: f32[3], index: 0, kind: input, shape index: {}]
  %s1 = inlined_call_operand.hbm [shape: f32[8,256], index: 1, kind: input, shape index: {}]
  %s2 = inlined_call_operand.hbm [shape: f32[2,8,64], index: 2, kind: input, shape index: {}]
  %s3 = inlined_call_operand.vmem [shape: f32[8,73], index: 3, kind: input, shape index: {}]
  %s4 = inlined_call_operand.hbm [shape: f32[8,256], index: 4, kind: output, shape index: {}]
  %s5 = sld [smem:[#allocation0]]
  $region38: #{tpu_custom_call.1} parent=0
    _
  %s7 = ssub.s32 1, %s5
  %s8 = scalar_select 0, %s7, %s5
  $region1: #{tpu_custom_call.1} parent=0
    #allocation2 [shape = 'u8[512]{0}', space=smem, size = 0x200, scoped, tag = 'input window, operand 0, single buffered']
    #allocation3 [shape = 's32[1]{0}', space=sflag, size = 0x4, scoped, tag = 'scoped memory for tpu_custom_call.1']
    #allocation4 [shape = 's32[1]{0}', space=sflag, size = 0x4, scoped, tag = 'scoped memory for tpu_custom_call.1']
    #allocation5 [shape = 's32[1]{0}', space=sflag, size = 0x4, scoped, tag = 'scoped memory for tpu_custom_call.1']
    #allocation6 [shape = 'u8[8192]{0}', space=vmem, size = 0x2000, scoped, tag = 'input window, operand 1, single buffered']
    #allocation7 [shape = 'u8[8192]{0}', space=vmem, size = 0x2000, scoped, tag = 'input window, operand 2, single buffered']
    #allocation8 [shape = 's32[1]{0}', space=sflag, size = 0x4, scoped, tag = 'scoped memory for tpu_custom_call.1']
    #allocation9 [shape = 'u8[8192]{0}', space=vmem, size = 0x2000, scoped, tag = 'output window, operand 0, single buffered']
    %9 = vsyncpa [#allocation5], 0
    %10 = vsyncpa [#allocation3], 0
    %11 = vsyncpa [#allocation8], 0
    %12 = vsyncpa [#allocation4], 0
    // Predicated region
    $region2: #{tpu_custom_call.1} parent=1 // pred_check
      _
    $region3: #{tpu_custom_call.1} parent=1 // pred_check_branch
      %14 = sbr.rel (0) target = $region5
    $region4: #{tpu_custom_call.1} parent=1 // pred_region
      %s16 = ssub.s32 16, 16
      %17 = vsyncadd [#allocation5], %s16
      %20 = dma.hbm_to_smem %s0, 16, [#allocation2], [#allocation5]
    $region5: #{tpu_custom_call.1} parent=1 // pred_fallthru
      _
    // Predicated region
    $region6: #{tpu_custom_call.1} parent=1 // pred_check
      _
    $region7: #{tpu_custom_call.1} parent=1 // pred_check_branch
      %22 = sbr.rel (0) target = $region9
    $region8: #{tpu_custom_call.1} parent=1 // pred_region
      %s24 = ssub.s32 256, 256
      %25 = vsyncadd [#allocation3], %s24
      %s27 = sshll.u32 [#allocation6], 4
      %s28 = int_to_ptr.vmem [resolvable:$true] %s27
      %30 = dma.hbm_to_vmem [thread:$0]  %s1, 256, %s28, [#allocation3]
    $region9: #{tpu_custom_call.1} parent=1 // pred_fallthru
      _
    // Predicated region
    $region10: #{tpu_custom_call.1} parent=1 // pred_check
      _
    $region11: #{tpu_custom_call.1} parent=1 // pred_check_branch
      %32 = sbr.rel (0) target = $region13
    $region12: #{tpu_custom_call.1} parent=1 // pred_region
      %s34 = ssub.s32 256, 256
      %35 = vsyncadd [#allocation8], %s34
      %s36 = sshll.u32 [#allocation7], 4
      %s37 = int_to_ptr.vmem [resolvable:$true] %s36
      %42 = dma.hbm_to_vmem [thread:$0]  %s2, 256, %s37, [#allocation8], 128, 128, 8
    $region13: #{tpu_custom_call.1} parent=1 // pred_fallthru
      _
    // Predicated region
    $region14: #{tpu_custom_call.1} parent=1 // pred_check
      _
    $region15: #{tpu_custom_call.1} parent=1 // pred_check_branch
      %44 = sbr.rel (0) target = $region17
    $region16: #{tpu_custom_call.1} parent=1 // pred_region
      _
    $region17: #{tpu_custom_call.1} parent=1 // pred_fallthru
      _
    // Predicated region
    $region18: #{tpu_custom_call.1} parent=1 // pred_check
      _
    $region19: #{tpu_custom_call.1} parent=1 // pred_check_branch
      %46 = sbr.rel (0) target = $region21
    $region20: #{tpu_custom_call.1} parent=1 // pred_region
      %47 = dma.done [#allocation5], 16
    $region21: #{tpu_custom_call.1} parent=1 // pred_fallthru
      _
    // Predicated region
    $region22: #{tpu_custom_call.1} parent=1 // pred_check
      _
    $region23: #{tpu_custom_call.1} parent=1 // pred_check_branch
      %49 = sbr.rel (0) target = $region25
    $region24: #{tpu_custom_call.1} parent=1 // pred_region
      %50 = dma.done [#allocation3], 256
    $region25: #{tpu_custom_call.1} parent=1 // pred_fallthru
      _
    // Predicated region
    $region26: #{tpu_custom_call.1} parent=1 // pred_check
      _
    $region27: #{tpu_custom_call.1} parent=1 // pred_check_branch
      %52 = sbr.rel (0) target = $region29
    $region28: #{tpu_custom_call.1} parent=1 // pred_region
      %53 = dma.done [#allocation8], 256
    $region29: #{tpu_custom_call.1} parent=1 // pred_fallthru
      _
    %54 = sfence
    %v55 = vlaneseq
    %v56 = vshrl.u32 %v55, 7
    %s57 = sld [smem:[#allocation2]]
    %v58 = vstv %s57
    %v59 = vadd.f32 %v58, 0.0
    %vm60 = vcmp.ge.s32.totalorder %v56, 4
    %s61 = sld [smem:[#allocation2 + $0x1]]
    %v62 = vstv %s61
    %v63 = vsel %vm60, %v62, %v59
    %v64 = vmul.f32 %v63, %v63
    %v65 = vadd.f32 %v64, 1.0
    %v66 = vrsqrt.pop %v65
    %v67 = vsub.f32 0.0, %v63
    %s68 = sld [smem:[#allocation2 + $0x2]]
    %v69 = vld [vmem:[#allocation7] sm:$0xff]
    %s70 = scalar_lea.vmem [#allocation7], 8
    %v71 = vld [vmem:[%s70] sm:$0xff]
    %v72 = vsub.f32 %v71, %v69
    %v73 = vstv %s68
    %v74 = vmul.f32 %v72, %v73
    %v75 = vadd.f32 %v69, %v74
    %vm76 = vcmask 523264
    %v77 = vsel %vm76, %v75, 0.0
    %v78 = vrot.slane %v77, 4
    %v79 = vadd.f32 %v77, %v78
    %v80 = vrot.slane %v79, 2
    %v81 = vadd.f32 %v79, %v80
    %v82 = vrot.slane %v81, 1
    %v83 = vadd.f32 %v81, %v82
    %v84 = vrcp.pop 8.0
    %v85 = vmul.f32 %v83, %v84
    %v86 = vld [vmem:[%s3] sm:$0xff]
    %v87 = vmul.f32 %v86, %v85
    %v88 = vsel %vm76, %v87, 0.0
    %89 = vadd.xlane.f32.xlu0 %v88
    %v90 = vpop.xlane.xlu0 %89
    %v91 = vadd.f32 %v90, %v86
    %v92 = vld [vmem:[#allocation6] sm:$0xff]
    %v93 = vld [vmem:[#allocation6 + $0x8] sm:$0xff]
    %v94 = vmul.f32 %v92, %v66
    %v95 = vmul.f32 %v93, %v66
    %97 = vset.pattern.permute.xlu0 65
    %98 = vperm.xlu0 %97, %v86
    %v99 = vpop.permute.xlu0 %98
    %v101 = vlaneseq
    %v102 = vshrl.u32 %v101, 7
    %v103 = vsub.s32 0, %v102
    %v104 = vrot.slane %v94, %v103
    %v105 = vlaneseq
    %v106 = vshrl.u32 %v105, 7
    %v107 = vsub.s32 0, %v106
    %v108 = vrot.slane %v95, %v107
    %v109 = vmul.f32 %v99, %v104
    %v110 = vmul.f32 %v99, %v108
    %111 = vset.pattern.permute.xlu0 66
    %112 = vperm.xlu0 %111, %v86
    %v113 = vpop.permute.xlu0 %112
    %v115 = vlaneseq
    %v116 = vshrl.u32 %v115, 7
    %v117 = vsub.s32 1, %v116
    %v118 = vrot.slane %v94, %v117
    %v119 = vlaneseq
    %v120 = vshrl.u32 %v119, 7
    %v121 = vsub.s32 1, %v120
    %v122 = vrot.slane %v95, %v121
    %v123 = vmul.f32 %v113, %v118
    %v124 = vmul.f32 %v113, %v122
    %v125 = vadd.f32 %v109, %v123
    %v126 = vadd.f32 %v110, %v124
    %127 = vset.pattern.permute.xlu0 67
    %128 = vperm.xlu0 %127, %v86
    %v129 = vpop.permute.xlu0 %128
    %v131 = vlaneseq
    %v132 = vshrl.u32 %v131, 7
    %v133 = vsub.s32 2, %v132
    %v134 = vrot.slane %v94, %v133
    %v135 = vlaneseq
    %v136 = vshrl.u32 %v135, 7
    %v137 = vsub.s32 2, %v136
    %v138 = vrot.slane %v95, %v137
    %v139 = vmul.f32 %v129, %v134
    %v140 = vmul.f32 %v129, %v138
    %v141 = vadd.f32 %v125, %v139
    %v142 = vadd.f32 %v126, %v140
    %143 = vset.pattern.permute.xlu0 68
    %144 = vperm.xlu0 %143, %v86
    %v145 = vpop.permute.xlu0 %144
    %v147 = vlaneseq
    %v148 = vshrl.u32 %v147, 7
    %v149 = vsub.s32 3, %v148
    %v150 = vrot.slane %v94, %v149
    %v151 = vlaneseq
    %v152 = vshrl.u32 %v151, 7
    %v153 = vsub.s32 3, %v152
    %v154 = vrot.slane %v95, %v153
    %v155 = vmul.f32 %v145, %v150
    %v156 = vmul.f32 %v145, %v154
    %v157 = vadd.f32 %v141, %v155
    %v158 = vadd.f32 %v142, %v156
    %159 = vset.pattern.permute.xlu0 69
    %160 = vperm.xlu0 %159, %v86
    %v161 = vpop.permute.xlu0 %160
    %v163 = vlaneseq
    %v164 = vshrl.u32 %v163, 7
    %v165 = vsub.s32 4, %v164
    %v166 = vrot.slane %v94, %v165
    %v167 = vlaneseq
    %v168 = vshrl.u32 %v167, 7
    %v169 = vsub.s32 4, %v168
    %v170 = vrot.slane %v95, %v169
    %v171 = vmul.f32 %v161, %v166
    %v172 = vmul.f32 %v161, %v170
    %v173 = vadd.f32 %v157, %v171
    %v174 = vadd.f32 %v158, %v172
    %175 = vset.pattern.permute.xlu0 70
    %176 = vperm.xlu0 %175, %v86
    %v177 = vpop.permute.xlu0 %176
    %v179 = vlaneseq
    %v180 = vshrl.u32 %v179, 7
    %v181 = vsub.s32 5, %v180
    %v182 = vrot.slane %v94, %v181
    %v183 = vlaneseq
    %v184 = vshrl.u32 %v183, 7
    %v185 = vsub.s32 5, %v184
    %v186 = vrot.slane %v95, %v185
    %v187 = vmul.f32 %v177, %v182
    %v188 = vmul.f32 %v177, %v186
    %v189 = vadd.f32 %v173, %v187
    %v190 = vadd.f32 %v174, %v188
    %191 = vset.pattern.permute.xlu0 71
    %192 = vperm.xlu0 %191, %v86
    %v193 = vpop.permute.xlu0 %192
    %v195 = vlaneseq
    %v196 = vshrl.u32 %v195, 7
    %v197 = vsub.s32 6, %v196
    %v198 = vrot.slane %v94, %v197
    %v199 = vlaneseq
    %v200 = vshrl.u32 %v199, 7
    %v201 = vsub.s32 6, %v200
    %v202 = vrot.slane %v95, %v201
    %v203 = vmul.f32 %v193, %v198
    %v204 = vmul.f32 %v193, %v202
    %v205 = vadd.f32 %v189, %v203
    %v206 = vadd.f32 %v190, %v204
    %207 = vset.pattern.permute.xlu0 72
    %208 = vperm.xlu0 %207, %v86
    %v209 = vpop.permute.xlu0 %208
    %v211 = vlaneseq
    %v212 = vshrl.u32 %v211, 7
    %v213 = vsub.s32 7, %v212
    %v214 = vrot.slane %v94, %v213
    %v215 = vlaneseq
    %v216 = vshrl.u32 %v215, 7
    %v217 = vsub.s32 7, %v216
    %v218 = vrot.slane %v95, %v217
    %v219 = vmul.f32 %v209, %v214
    %v220 = vmul.f32 %v209, %v218
    %v221 = vadd.f32 %v205, %v219
    %v222 = vadd.f32 %v206, %v220
    %224 = vset.pattern.permute.xlu0 64
    %225 = vperm.xlu0 %224, %v91
    %v226 = vpop.permute.xlu0 %225
    %v228 = vadd.f32 %v221, %v226
    %v229 = vadd.f32 %v222, %v226
    %v230 = vmul.f32 %v228, %v67
    %v231 = vmul.f32 %v229, %v67
    %v232 = vadd.f32 %v92, %v230
    %v233 = vadd.f32 %v93, %v231
    %234 = vst [vmem:[#allocation9] sm:$0xff] %v232
    %235 = vst [vmem:[#allocation9 + $0x8] sm:$0xff] %v233
    // Predicated region
    $region30: #{tpu_custom_call.1} parent=1 // pred_check
      _
    $region31: #{tpu_custom_call.1} parent=1 // pred_check_branch
      %237 = sbr.rel (0) target = $region33
    $region32: #{tpu_custom_call.1} parent=1 // pred_region
      %s239 = ssub.s32 256, 256
      %240 = vsyncadd [#allocation4], %s239
      %s242 = sshll.u32 [#allocation9], 4
      %s243 = int_to_ptr.vmem [resolvable:$true] %s242
      %245 = dma.vmem_to_hbm [thread:$0]  %s243, 256, %s4, [#allocation4]
    $region33: #{tpu_custom_call.1} parent=1 // pred_fallthru
      _
    // Predicated region
    $region34: #{tpu_custom_call.1} parent=1 // pred_check
      _
    $region35: #{tpu_custom_call.1} parent=1 // pred_check_branch
      %247 = sbr.rel (0) target = $region37
    $region36: #{tpu_custom_call.1} parent=1 // pred_region
      %248 = dma.done [#allocation4], 256
    $region37: #{tpu_custom_call.1} parent=1 // pred_fallthru
      _
    %249 = vsyncpa [#allocation3], 1
    %250 = vsyncpa [#allocation8], 1
    %251 = vsyncpa [#allocation4], 1
    %252 = vsyncpa [#allocation5], 1

</llo_original>
